<compile_context>
chip_gen: v6e
topology: v6e:2x2x1
jax: 0.10.0
libtpu: 0.0.40
codegen_flags: <defaults>
</compile_context>

<pallas_src>
import math
import functools

import jax
import jax.numpy as jnp
from jax import lax
from jax.experimental import pallas as pl
from jax.experimental.pallas import tpu as pltpu


# ----------------------------- config (synthetic) -----------------------------
VOCAB_SIZE = 32
TYPE_VOCAB_SIZE = 4
MAX_POSITION_EMBEDDINGS = 16
EMBEDDING_SIZE = 32
PAD_ID = 0
LAYER_NORM_EPS = 1e-12
FIXED_PE = True
SEQ_LEN = 8     # S (max_len)
BATCH = 2       # N

# Total table bytes allowed for the all-VMEM (one-hot MXU) path.
_VMEM_TABLE_BUDGET_BYTES = 8 * 1024 * 1024


def _get_positional_embeddings(max_len, embedding_size):
    """JAX port of _get_postitional_embeddings (sinusoidal PE)."""
    position = jnp.arange(0, max_len, dtype=jnp.float32)[:, None]
    div_term = jnp.exp(
        jnp.arange(0, embedding_size, 2, dtype=jnp.float32)
        * (-math.log(10000.0) / embedding_size)
    )
    angles = position * div_term  # (max_len, E/2)
    pe = jnp.zeros((max_len, embedding_size), dtype=jnp.float32)
    pe = pe.at[:, 0::2].set(jnp.sin(angles))
    pe = pe.at[:, 1::2].set(jnp.cos(angles))
    return pe


# ---------------------------------- kernel ------------------------------------
def _embeddings_kernel(tok_ref, typ_ref, pos_ref,        # (t_tile, 1) int32 ids
                       word_ref, type_ref, pos_tbl_ref,  # full tables in VMEM
                       gamma_ref, beta_ref,              # (1, E) LayerNorm affine
                       out_ref,                          # (t_tile, E)
                       *, eps):
    t_tile = out_ref.shape[0]

    def gather(ids_ref, tbl_ref):
        # On-chip gather via one-hot matmul on the (otherwise idle) MXU.
        # Exact: rows of one_hot are 0/1, so the dot reproduces the table row.
        rows = tbl_ref.shape[0]
        ids = ids_ref[...]                                       # (t_tile, 1)
        one_hot = (ids == lax.broadcasted_iota(jnp.int32, (t_tile, rows), 1)
                   ).astype(jnp.float32)                         # (t_tile, rows)
        return jnp.dot(one_hot, tbl_ref[...],
                       preferred_element_type=jnp.float32)       # (t_tile, E)

    emb = (gather(tok_ref, word_ref)
           + gather(typ_ref, type_ref)
           + gather(pos_ref, pos_tbl_ref))                       # (t_tile, E) f32

    # LayerNorm (biased variance, matching torch).
    mean = jnp.mean(emb, axis=-1, keepdims=True)
    centered = emb - mean
    var = jnp.mean(centered * centered, axis=-1, keepdims=True)
    normed = centered * lax.rsqrt(var + eps)
    out_ref[...] = normed * gamma_ref[...] + beta_ref[...]
    # TODO(synk): dropout omitted (eval-mode identity); training-mode dropout
    # would use pltpu.prng_seed + pltpu.stateful_bernoulli.


# --------------------------------- wrapper -------------------------------------
def embeddings_forward(token_ids, type_ids, position_ids, params,
                       eps=LAYER_NORM_EPS):
    """token_ids/type_ids/position_ids: (S, N) int32 -> (S, N, E) float32."""
    S, N = token_ids.shape
    T = S * N
    V, E = params["word"].shape
    TV = params["type"].shape[0]
    P = params["position"].shape[0]

    table_bytes = (V + TV + P) * E * 4
    if table_bytes > _VMEM_TABLE_BUDGET_BYTES:
        # TODO(synk): HBM DMA-gather fallback for very large vocab tables.
        raise NotImplementedError("embedding tables too large for VMEM-resident path")

    # Token-tile size: 512 rows at realistic scale; for tiny problems a single
    # grid step (per-grid-step overhead ~0.35 us otherwise dominates).
    if T >= 512:
        t_tile = 512
    else:
        t_tile = max(8, ((T + 7) // 8) * 8)
    t_pad = ((T + t_tile - 1) // t_tile) * t_tile
    num_tiles = t_pad // t_tile

    def prep_ids(ids, vocab):
        flat = jnp.clip(ids.reshape(T).astype(jnp.int32), 0, vocab - 1)
        flat = jnp.pad(flat, (0, t_pad - T))       # pad with id 0 (valid row)
        return flat.reshape(t_pad, 1)              # sublane-oriented ids

    tok = prep_ids(token_ids, V)
    typ = prep_ids(type_ids, TV)
    pos = prep_ids(position_ids, P)

    id_spec = pl.BlockSpec((t_tile, 1), lambda i: (i, 0))
    grid_spec = pltpu.PrefetchScalarGridSpec(
        num_scalar_prefetch=0,
        grid=(num_tiles,),
        in_specs=[
            id_spec, id_spec, id_spec,
            pl.BlockSpec((V, E), lambda i: (0, 0)),   # word table, VMEM-resident
            pl.BlockSpec((TV, E), lambda i: (0, 0)),  # type table, VMEM-resident
            pl.BlockSpec((P, E), lambda i: (0, 0)),   # position table, resident
            pl.BlockSpec((1, E), lambda i: (0, 0)),   # gamma
            pl.BlockSpec((1, E), lambda i: (0, 0)),   # beta
        ],
        out_specs=pl.BlockSpec((t_tile, E), lambda i: (i, 0)),
    )

    out = pl.pallas_call(
        functools.partial(_embeddings_kernel, eps=eps),
        out_shape=jax.ShapeDtypeStruct((t_pad, E), jnp.float32),
        grid_spec=grid_spec,
        compiler_params=pltpu.CompilerParams(
            dimension_semantics=("parallel",),   # shard T tiles across TCs (v7x)
        ),
    )(tok, typ, pos,
      params["word"], params["type"], params["position"],
      params["gamma"], params["beta"])

    return out[:T].reshape(S, N, E)


def init_params(key):
    """Deterministic parameter init mimicking the module's __init__."""
    k_word, k_type, k_pos = jax.random.split(key, 3)

    word = 0.02 * jax.random.normal(k_word, (VOCAB_SIZE, EMBEDDING_SIZE),
                                    dtype=jnp.float32)
    word = word.at[PAD_ID].set(0.0)  # padding_idx row zeroed

    type_tbl = 0.02 * jax.random.normal(k_type, (TYPE_VOCAB_SIZE, EMBEDDING_SIZE),
                                        dtype=jnp.float32)
    type_tbl = type_tbl.at[PAD_ID].set(0.0)

    if FIXED_PE:
        pe = _get_positional_embeddings(MAX_POSITION_EMBEDDINGS - 1, EMBEDDING_SIZE)
        pos_tbl = jnp.concatenate(
            [jnp.zeros((1, EMBEDDING_SIZE), jnp.float32), pe], axis=0)
    else:
        pos_tbl = 0.02 * jax.random.normal(
            k_pos, (MAX_POSITION_EMBEDDINGS, EMBEDDING_SIZE), dtype=jnp.float32)
        pos_tbl = pos_tbl.at[PAD_ID].set(0.0)

    gamma = jnp.ones((1, EMBEDDING_SIZE), jnp.float32)
    beta = jnp.zeros((1, EMBEDDING_SIZE), jnp.float32)

    return {"word": word, "type": type_tbl, "position": pos_tbl,
            "gamma": gamma, "beta": beta}


def _reference(token_ids, type_ids, position_ids, params, eps=LAYER_NORM_EPS):
    emb = (params["word"][token_ids]
           + params["type"][type_ids]
           + params["position"][position_ids])
    mean = jnp.mean(emb, axis=-1, keepdims=True)
    var = jnp.mean((emb - mean) ** 2, axis=-1, keepdims=True)
    normed = (emb - mean) / jnp.sqrt(var + eps)
    return normed * params["gamma"][0] + params["beta"][0]


if __name__ == "__main__":
    key = jax.random.PRNGKey(0)
    k_params, k_tok, k_typ = jax.random.split(key, 3)

    params = init_params(k_params)

    # (S, N) int32 inputs
    token_ids = jax.random.randint(k_tok, (SEQ_LEN, BATCH), 0, VOCAB_SIZE,
                                   dtype=jnp.int32)
    type_ids = jax.random.randint(k_typ, (SEQ_LEN, BATCH), 0, TYPE_VOCAB_SIZE,
                                  dtype=jnp.int32)
    position_ids = jnp.broadcast_to(
        jnp.arange(SEQ_LEN, dtype=jnp.int32)[:, None], (SEQ_LEN, BATCH))

    out = embeddings_forward(token_ids, type_ids, position_ids, params)
    out = jax.block_until_ready(out)

    ref = _reference(token_ids, type_ids, position_ids, params)
    assert out.shape == (SEQ_LEN, BATCH, EMBEDDING_SIZE)
    assert jnp.allclose(out, ref, atol=1e-4, rtol=1e-4), "mismatch vs reference"

    print("KERNEL_OK")
</pallas_src>

<mosaic_0001>
module attributes {stable_mosaic.version = 11 : i64} {
  func.func @_embeddings_kernel(%arg0: i32, %arg1: memref<16x1xi32, #tpu.memory_space<vmem>>, %arg2: memref<16x1xi32, #tpu.memory_space<vmem>>, %arg3: memref<16x1xi32, #tpu.memory_space<vmem>>, %arg4: memref<32x32xf32, #tpu.memory_space<vmem>>, %arg5: memref<4x32xf32, #tpu.memory_space<vmem>>, %arg6: memref<16x32xf32, #tpu.memory_space<vmem>>, %arg7: memref<1x32xf32, #tpu.memory_space<vmem>>, %arg8: memref<1x32xf32, #tpu.memory_space<vmem>>, %arg9: memref<16x32xf32, #tpu.memory_space<vmem>>) attributes {dimension_semantics = [#tpu.dimension_semantics<parallel>], iteration_bounds = array<i64: 1>, scalar_prefetch = 0 : i64, scratch_operands = 0 : i64, tpu.core_type = #tpu.core_type<tc>, window_params = [{transform_indices = @transform_0, window_bounds = array<i64: 16, 1>}, {transform_indices = @transform_1, window_bounds = array<i64: 16, 1>}, {transform_indices = @transform_2, window_bounds = array<i64: 16, 1>}, {pipeline_mode = #tpu.pipeline_mode<synchronous>, transform_indices = @transform_3, window_bounds = array<i64: 32, 32>}, {pipeline_mode = #tpu.pipeline_mode<synchronous>, transform_indices = @transform_4, window_bounds = array<i64: 4, 32>}, {pipeline_mode = #tpu.pipeline_mode<synchronous>, transform_indices = @transform_5, window_bounds = array<i64: 16, 32>}, {pipeline_mode = #tpu.pipeline_mode<synchronous>, transform_indices = @transform_6, window_bounds = array<i64: 1, 32>}, {pipeline_mode = #tpu.pipeline_mode<synchronous>, transform_indices = @transform_7, window_bounds = array<i64: 1, 32>}, {transform_indices = @transform_8, window_bounds = array<i64: 16, 32>}]} {
    %c0 = arith.constant 0 : index
    %c0_0 = arith.constant 0 : index
    %0 = vector.load %arg1[%c0, %c0_0] : memref<16x1xi32, #tpu.memory_space<vmem>>, vector<16x1xi32>
    %1 = tpu.iota {dimensions = array<i32: 1>} : vector<16x32xi32>
    %2 = vector.broadcast %0 : vector<16x1xi32> to vector<16x32xi32>
    %3 = arith.cmpi eq, %2, %1 : vector<16x32xi32>
    %4 = arith.extui %3 : vector<16x32xi1> to vector<16x32xi32>
    %5 = arith.sitofp %4 : vector<16x32xi32> to vector<16x32xf32>
    %c0_1 = arith.constant 0 : index
    %c0_2 = arith.constant 0 : index
    %6 = vector.load %arg4[%c0_1, %c0_2] : memref<32x32xf32, #tpu.memory_space<vmem>>, vector<32x32xf32>
    %cst = arith.constant dense<0.000000e+00> : vector<16x32xf32>
    %7 = tpu.matmul %5, %6, %cst {dimension_numbers = #tpu.dot_dimension_numbers<[1], [0], [0], [1], [0, 0, 1, 1], [], []>} : vector<16x32xf32>, vector<32x32xf32>, vector<16x32xf32> -> vector<16x32xf32>
    %c0_3 = arith.constant 0 : index
    %c0_4 = arith.constant 0 : index
    %8 = vector.load %arg2[%c0_3, %c0_4] : memref<16x1xi32, #tpu.memory_space<vmem>>, vector<16x1xi32>
    %9 = tpu.iota {dimensions = array<i32: 1>} : vector<16x4xi32>
    %10 = vector.broadcast %8 : vector<16x1xi32> to vector<16x4xi32>
    %11 = arith.cmpi eq, %10, %9 : vector<16x4xi32>
    %12 = arith.extui %11 : vector<16x4xi1> to vector<16x4xi32>
    %13 = arith.sitofp %12 : vector<16x4xi32> to vector<16x4xf32>
    %c0_5 = arith.constant 0 : index
    %c0_6 = arith.constant 0 : index
    %14 = vector.load %arg5[%c0_5, %c0_6] : memref<4x32xf32, #tpu.memory_space<vmem>>, vector<4x32xf32>
    %cst_7 = arith.constant dense<0.000000e+00> : vector<16x32xf32>
    %15 = tpu.matmul %13, %14, %cst_7 {dimension_numbers = #tpu.dot_dimension_numbers<[1], [0], [0], [1], [0, 0, 1, 1], [], []>} : vector<16x4xf32>, vector<4x32xf32>, vector<16x32xf32> -> vector<16x32xf32>
    %16 = arith.addf %7, %15 : vector<16x32xf32>
    %c0_8 = arith.constant 0 : index
    %c0_9 = arith.constant 0 : index
    %17 = vector.load %arg3[%c0_8, %c0_9] : memref<16x1xi32, #tpu.memory_space<vmem>>, vector<16x1xi32>
    %18 = tpu.iota {dimensions = array<i32: 1>} : vector<16x16xi32>
    %19 = vector.broadcast %17 : vector<16x1xi32> to vector<16x16xi32>
    %20 = arith.cmpi eq, %19, %18 : vector<16x16xi32>
    %21 = arith.extui %20 : vector<16x16xi1> to vector<16x16xi32>
    %22 = arith.sitofp %21 : vector<16x16xi32> to vector<16x16xf32>
    %c0_10 = arith.constant 0 : index
    %c0_11 = arith.constant 0 : index
    %23 = vector.load %arg6[%c0_10, %c0_11] : memref<16x32xf32, #tpu.memory_space<vmem>>, vector<16x32xf32>
    %cst_12 = arith.constant dense<0.000000e+00> : vector<16x32xf32>
    %24 = tpu.matmul %22, %23, %cst_12 {dimension_numbers = #tpu.dot_dimension_numbers<[1], [0], [0], [1], [0, 0, 1, 1], [], []>} : vector<16x16xf32>, vector<16x32xf32>, vector<16x32xf32> -> vector<16x32xf32>
    %25 = arith.addf %16, %24 : vector<16x32xf32>
    %cst_13 = arith.constant dense<0.000000e+00> : vector<16xf32>
    %26 = vector.multi_reduction <add>, %25, %cst_13 [1] : vector<16x32xf32> to vector<16xf32>
    %27 = vector.shape_cast %26 : vector<16xf32> to vector<16x1xf32>
    %cst_14 = arith.constant 3.200000e+01 : f32
    %28 = vector.broadcast %cst_14 : f32 to vector<16x1xf32>
    %29 = arith.divf %27, %28 : vector<16x1xf32>
    %30 = vector.broadcast %29 : vector<16x1xf32> to vector<16x32xf32>
    %31 = arith.subf %25, %30 : vector<16x32xf32>
    %32 = arith.mulf %31, %31 : vector<16x32xf32>
    %cst_15 = arith.constant dense<0.000000e+00> : vector<16xf32>
    %33 = vector.multi_reduction <add>, %32, %cst_15 [1] : vector<16x32xf32> to vector<16xf32>
    %34 = vector.shape_cast %33 : vector<16xf32> to vector<16x1xf32>
    %cst_16 = arith.constant 3.200000e+01 : f32
    %35 = vector.broadcast %cst_16 : f32 to vector<16x1xf32>
    %36 = arith.divf %34, %35 : vector<16x1xf32>
    %cst_17 = arith.constant 9.99999996E-13 : f32
    %37 = vector.broadcast %cst_17 : f32 to vector<16x1xf32>
    %38 = arith.addf %36, %37 : vector<16x1xf32>
    %39 = math.rsqrt %38 : vector<16x1xf32>
    %40 = vector.broadcast %39 : vector<16x1xf32> to vector<16x32xf32>
    %41 = arith.mulf %31, %40 : vector<16x32xf32>
    %c0_18 = arith.constant 0 : index
    %c0_19 = arith.constant 0 : index
    %42 = vector.load %arg7[%c0_18, %c0_19] : memref<1x32xf32, #tpu.memory_space<vmem>>, vector<1x32xf32>
    %43 = vector.broadcast %42 : vector<1x32xf32> to vector<16x32xf32>
    %44 = arith.mulf %41, %43 : vector<16x32xf32>
    %c0_20 = arith.constant 0 : index
    %c0_21 = arith.constant 0 : index
    %45 = vector.load %arg8[%c0_20, %c0_21] : memref<1x32xf32, #tpu.memory_space<vmem>>, vector<1x32xf32>
    %46 = vector.broadcast %45 : vector<1x32xf32> to vector<16x32xf32>
    %47 = arith.addf %44, %46 : vector<16x32xf32>
    %c0_22 = arith.constant 0 : index
    %c0_23 = arith.constant 0 : index
    %48 = vector.load %arg9[%c0_22, %c0_23] : memref<16x32xf32, #tpu.memory_space<vmem>>, vector<16x32xf32>
    tpu.vector_store %arg9[%c0_22, %c0_23], %47 {strides = array<i32>} : memref<16x32xf32, #tpu.memory_space<vmem>>, vector<16x32xf32>,
    return
  }
  func.func @transform_0(%arg0: i32) -> (i32, i32) {
    %c0_i32 = arith.constant 0 : i32
    %c0_i32_0 = arith.constant 0 : i32
    return %arg0, %c0_i32 : i32, i32
  }
  func.func @transform_1(%arg0: i32) -> (i32, i32) {
    %c0_i32 = arith.constant 0 : i32
    %c0_i32_0 = arith.constant 0 : i32
    return %arg0, %c0_i32 : i32, i32
  }
  func.func @transform_2(%arg0: i32) -> (i32, i32) {
    %c0_i32 = arith.constant 0 : i32
    %c0_i32_0 = arith.constant 0 : i32
    return %arg0, %c0_i32 : i32, i32
  }
  func.func @transform_3(%arg0: i32) -> (i32, i32) {
    %c0_i32 = arith.constant 0 : i32
    %c0_i32_0 = arith.constant 0 : i32
    %c0_i32_1 = arith.constant 0 : i32
    return %c0_i32, %c0_i32_0 : i32, i32
  }
  func.func @transform_4(%arg0: i32) -> (i32, i32) {
    %c0_i32 = arith.constant 0 : i32
    %c0_i32_0 = arith.constant 0 : i32
    %c0_i32_1 = arith.constant 0 : i32
    return %c0_i32, %c0_i32_0 : i32, i32
  }
  func.func @transform_5(%arg0: i32) -> (i32, i32) {
    %c0_i32 = arith.constant 0 : i32
    %c0_i32_0 = arith.constant 0 : i32
    %c0_i32_1 = arith.constant 0 : i32
    return %c0_i32, %c0_i32_0 : i32, i32
  }
  func.func @transform_6(%arg0: i32) -> (i32, i32) {
    %c0_i32 = arith.constant 0 : i32
    %c0_i32_0 = arith.constant 0 : i32
    %c0_i32_1 = arith.constant 0 : i32
    return %c0_i32, %c0_i32_0 : i32, i32
  }
  func.func @transform_7(%arg0: i32) -> (i32, i32) {
    %c0_i32 = arith.constant 0 : i32
    %c0_i32_0 = arith.constant 0 : i32
    %c0_i32_1 = arith.constant 0 : i32
    return %c0_i32, %c0_i32_0 : i32, i32
  }
  func.func @transform_8(%arg0: i32) -> (i32, i32) {
    %c0_i32 = arith.constant 0 : i32
    %c0_i32_0 = arith.constant 0 : i32
    return %arg0, %c0_i32 : i32, i32
  }
}

</mosaic_0001>

<llo_original>
// kernel: tpu_custom_call.1
$region0: #{tpu_custom_call.1}
  #allocation0 [shape = 'u32[]', space=smem, size = 0x4, offset = 0x4, fixed_abs, tag = 'smem constant byte address 0x4 - core index']
  #allocation1 [shape = 'u32[144,128]{1,0:T(1,128)}', space=vmem, size = 0x12000, scoped, tag = 'internal scratch']
  %s0 = inlined_call_operand.vmem [shape: s32[16,1], index: 0, kind: input, shape index: {}]
  %s1 = inlined_call_operand.vmem [shape: s32[16,1], index: 1, kind: input, shape index: {}]
  %s2 = inlined_call_operand.vmem [shape: s32[16,1], index: 2, kind: input, shape index: {}]
  %s3 = inlined_call_operand.vmem [shape: f32[32,32], index: 3, kind: input, shape index: {}]
  %s4 = inlined_call_operand.vmem [shape: f32[4,32], index: 4, kind: input, shape index: {}]
  %s5 = inlined_call_operand.vmem [shape: f32[16,32], index: 5, kind: input, shape index: {}]
  %s6 = inlined_call_operand.vmem [shape: f32[1,32], index: 6, kind: input, shape index: {}]
  %s7 = inlined_call_operand.vmem [shape: f32[1,32], index: 7, kind: input, shape index: {}]
  %s8 = inlined_call_operand.hbm [shape: f32[16,32], index: 8, kind: output, shape index: {}]
  %s9 = sld [smem:[#allocation0]]
  $region42: #{tpu_custom_call.1} parent=0
    _
  %s11 = ssub.s32 1, %s9
  %s12 = scalar_select 0, %s11, %s9
  $region1: #{tpu_custom_call.1} parent=0
    #allocation2 [shape = 'u8[8192]{0}', space=vmem, size = 0x2000, scoped, tag = 'output window, operand 0, single buffered']
    #allocation3 [shape = 's32[1]{0}', space=sflag, size = 0x4, scoped, tag = 'scoped memory for tpu_custom_call.1']
    %13 = vsyncpa [#allocation3], 0
    // Predicated region
    $region2: #{tpu_custom_call.1} parent=1 // pred_check
      _
    $region3: #{tpu_custom_call.1} parent=1 // pred_check_branch
      %15 = sbr.rel (0) target = $region5
    $region4: #{tpu_custom_call.1} parent=1 // pred_region
      _
    $region5: #{tpu_custom_call.1} parent=1 // pred_fallthru
      _
    // Predicated region
    $region6: #{tpu_custom_call.1} parent=1 // pred_check
      _
    $region7: #{tpu_custom_call.1} parent=1 // pred_check_branch
      %17 = sbr.rel (0) target = $region9
    $region8: #{tpu_custom_call.1} parent=1 // pred_region
      _
    $region9: #{tpu_custom_call.1} parent=1 // pred_fallthru
      _
    // Predicated region
    $region10: #{tpu_custom_call.1} parent=1 // pred_check
      _
    $region11: #{tpu_custom_call.1} parent=1 // pred_check_branch
      %19 = sbr.rel (0) target = $region13
    $region12: #{tpu_custom_call.1} parent=1 // pred_region
      _
    $region13: #{tpu_custom_call.1} parent=1 // pred_fallthru
      _
    // Predicated region
    $region14: #{tpu_custom_call.1} parent=1 // pred_check
      _
    $region15: #{tpu_custom_call.1} parent=1 // pred_check_branch
      %21 = sbr.rel (0) target = $region17
    $region16: #{tpu_custom_call.1} parent=1 // pred_region
      _
    $region17: #{tpu_custom_call.1} parent=1 // pred_fallthru
      _
    // Predicated region
    $region18: #{tpu_custom_call.1} parent=1 // pred_check
      _
    $region19: #{tpu_custom_call.1} parent=1 // pred_check_branch
      %23 = sbr.rel (0) target = $region21
    $region20: #{tpu_custom_call.1} parent=1 // pred_region
      _
    $region21: #{tpu_custom_call.1} parent=1 // pred_fallthru
      _
    // Predicated region
    $region22: #{tpu_custom_call.1} parent=1 // pred_check
      _
    $region23: #{tpu_custom_call.1} parent=1 // pred_check_branch
      %25 = sbr.rel (0) target = $region25
    $region24: #{tpu_custom_call.1} parent=1 // pred_region
      _
    $region25: #{tpu_custom_call.1} parent=1 // pred_fallthru
      _
    // Predicated region
    $region26: #{tpu_custom_call.1} parent=1 // pred_check
      _
    $region27: #{tpu_custom_call.1} parent=1 // pred_check_branch
      %27 = sbr.rel (0) target = $region29
    $region28: #{tpu_custom_call.1} parent=1 // pred_region
      _
    $region29: #{tpu_custom_call.1} parent=1 // pred_fallthru
      _
    // Predicated region
    $region30: #{tpu_custom_call.1} parent=1 // pred_check
      _
    $region31: #{tpu_custom_call.1} parent=1 // pred_check_branch
      %29 = sbr.rel (0) target = $region33
    $region32: #{tpu_custom_call.1} parent=1 // pred_region
      _
    $region33: #{tpu_custom_call.1} parent=1 // pred_fallthru
      _
    %v30 = vld [vmem:[%s0] sm:$0xff]
    %v31 = vld [vmem:[%s0 + $0x8] sm:$0xff]
    %v32 = vlaneseq
    %v33 = vand.u32 %v32, 127
    %34 = vset.pattern.permute.xlu0 0
    %35 = vperm.xlu0 %34, %v30
    %v36 = vpop.permute.xlu0 %35
    %37 = vset.pattern.permute.xlu0 0
    %38 = vperm.xlu0 %37, %v31
    %v39 = vpop.permute.xlu0 %38
    %vm40 = vcmp.eq.s32.totalorder %v36, %v33
    %vm41 = vcmp.eq.s32.totalorder %v39, %v33
    %v42 = vsel %vm40, 1, 0
    %v43 = vsel %vm41, 1, 0
    %v44 = vcvt.s32.f32 %v42
    %v45 = vcvt.s32.f32 %v43
    %v46 = vld [vmem:[%s3] sm:$0xff]
    %v47 = vld [vmem:[%s3 + $0x8] sm:$0xff]
    %v48 = vld [vmem:[%s3 + $0x10] sm:$0xff]
    %v49 = vld [vmem:[%s3 + $0x18] sm:$0xff]
    %v50 = vld [vmem:[%s1] sm:$0xff]
    %v51 = vld [vmem:[%s1 + $0x8] sm:$0xff]
    %52 = vset.pattern.permute.xlu0 0
    %53 = vperm.xlu0 %52, %v50
    %v54 = vpop.permute.xlu0 %53
    %55 = vset.pattern.permute.xlu0 0
    %56 = vperm.xlu0 %55, %v51
    %v57 = vpop.permute.xlu0 %56
    %vm58 = vcmp.eq.s32.totalorder %v54, %v33
    %vm59 = vcmp.eq.s32.totalorder %v57, %v33
    %v60 = vsel %vm58, 1, 0
    %v61 = vsel %vm59, 1, 0
    %v62 = vcvt.s32.f32 %v60
    %v63 = vcvt.s32.f32 %v61
    %v64 = vld [vmem:[%s4] sm:$0xf]
    %vm65 = vcmask 31744
    %v67 = vsel %vm65, %v62, 0
    %v70 = vsel %vm65, %v63, 0
    %vm72 = vcmask 1043456
    %v74 = vsel %vm72, %v64, 0
    %76 = vmatprep.subr.mxu0 0.0
    %77 = vmatpush1.msra.mxu0 0.0
    %78 = vmatprep.subr.mxu0 0.0
    %79 = vmatpush1.msra.mxu0 0.0
    %80 = vmatprep.subr.mxu0 0.0
    %81 = vmatpush1.msra.mxu0 0.0
    %82 = vmatprep.subr.mxu0 0.0
    %83 = vmatpush1.msra.mxu0 0.0
    %84 = vmatprep.subr.mxu0 0.0
    %85 = vmatpush1.msra.mxu0 0.0
    %86 = vmatprep.subr.mxu0 0.0
    %87 = vmatpush1.msra.mxu0 0.0
    %88 = vmatprep.subr.mxu0 0.0
    %89 = vmatpush1.msra.mxu0 0.0
    %90 = vmatprep.subr.mxu0 0.0
    %91 = vmatpush1.msra.mxu0 0.0
    %92 = vmatprep.subr.mxu0 0.0
    %93 = vmatpush1.msra.mxu0 0.0
    %94 = vmatprep.subr.mxu0 0.0
    %95 = vmatpush1.msra.mxu0 0.0
    %96 = vmatprep.subr.mxu0 0.0
    %97 = vmatpush1.msra.mxu0 0.0
    %98 = vmatprep.subr.mxu0 0.0
    %99 = vmatpush1.msra.mxu0 0.0
    %100 = vmatprep.subr.mxu0 0.0
    %101 = vmatpush1.msra.mxu0 0.0
    %102 = vmatprep.subr.mxu0 0.0
    %103 = vmatpush1.msra.mxu0 0.0
    %104 = vmatprep.subr.mxu0 0.0
    %105 = vmatpush1.msra.mxu0 0.0
    %106 = vmatprep.subr.mxu0 0.0
    %107 = vmatpush1.msra.mxu0 %v74
    %108 = vmatprep.subr.mxu0 0.0
    %109 = vmatpush2.msra.mxu0 0.0
    %110 = vmatprep.subr.mxu0 0.0
    %111 = vmatpush2.msra.mxu0 0.0
    %112 = vmatprep.subr.mxu0 0.0
    %113 = vmatpush2.msra.mxu0 0.0
    %114 = vmatprep.subr.mxu0 0.0
    %115 = vmatpush2.msra.mxu0 0.0
    %116 = vmatprep.subr.mxu0 0.0
    %117 = vmatpush2.msra.mxu0 0.0
    %118 = vmatprep.subr.mxu0 0.0
    %119 = vmatpush2.msra.mxu0 0.0
    %120 = vmatprep.subr.mxu0 0.0
    %121 = vmatpush2.msra.mxu0 0.0
    %122 = vmatprep.subr.mxu0 0.0
    %123 = vmatpush2.msra.mxu0 0.0
    %124 = vmatprep.subr.mxu0 0.0
    %125 = vmatpush2.msra.mxu0 0.0
    %126 = vmatprep.subr.mxu0 0.0
    %127 = vmatpush2.msra.mxu0 0.0
    %128 = vmatprep.subr.mxu0 0.0
    %129 = vmatpush2.msra.mxu0 0.0
    %130 = vmatprep.subr.mxu0 0.0
    %131 = vmatpush2.msra.mxu0 0.0
    %132 = vmatprep.subr.mxu0 0.0
    %133 = vmatpush2.msra.mxu0 0.0
    %134 = vmatprep.subr.mxu0 0.0
    %135 = vmatpush2.msra.mxu0 0.0
    %136 = vmatprep.subr.mxu0 0.0
    %137 = vmatpush2.msra.mxu0 0.0
    %138 = vmatprep.subr.mxu0 0.0
    %139 = vmatpush2.msra.mxu0 0.0
    %140 = vmatprep.mubr.f32.mxu0 0.0
    %141 = vmatmul.mubr.f32.gmra.mxu0 %v67
    %v142 = vpop.f32.mrf.mxu0
    %v143 = vadd.f32 0.0, %v142
    %v144 = vpop.f32.mrf.mxu0
    %145 = vmatprep.mubr.f32.mxu0 0.0
    %146 = vmatmul.mubr.f32.gmra.mxu0 %v70
    %v147 = vpop.f32.mrf.mxu0
    %v148 = vadd.f32 0.0, %v147
    %v149 = vpop.f32.mrf.mxu0
    %150 = vdwg.mxu0
    %vm151 = vcmask 261120
    %v153 = vsel %vm151, %v44, 0
    %v156 = vsel %vm151, %v45, 0
    %158 = vmatprep.subr.mxu0 0.0
    %159 = vmatpush1.msra.mxu0 0.0
    %160 = vmatprep.subr.mxu0 0.0
    %161 = vmatpush1.msra.mxu0 0.0
    %162 = vmatprep.subr.mxu0 0.0
    %163 = vmatpush1.msra.mxu0 0.0
    %164 = vmatprep.subr.mxu0 0.0
    %165 = vmatpush1.msra.mxu0 0.0
    %166 = vmatprep.subr.mxu0 0.0
    %167 = vmatpush1.msra.mxu0 0.0
    %168 = vmatprep.subr.mxu0 0.0
    %169 = vmatpush1.msra.mxu0 0.0
    %170 = vmatprep.subr.mxu0 0.0
    %171 = vmatpush1.msra.mxu0 0.0
    %172 = vmatprep.subr.mxu0 0.0
    %173 = vmatpush1.msra.mxu0 0.0
    %174 = vmatprep.subr.mxu0 0.0
    %175 = vmatpush1.msra.mxu0 0.0
    %176 = vmatprep.subr.mxu0 0.0
    %177 = vmatpush1.msra.mxu0 0.0
    %178 = vmatprep.subr.mxu0 0.0
    %179 = vmatpush1.msra.mxu0 0.0
    %180 = vmatprep.subr.mxu0 0.0
    %181 = vmatpush1.msra.mxu0 0.0
    %182 = vmatprep.subr.mxu0 0.0
    %183 = vmatpush1.msra.mxu0 %v49
    %184 = vmatprep.subr.mxu0 0.0
    %185 = vmatpush1.msra.mxu0 %v48
    %186 = vmatprep.subr.mxu0 0.0
    %187 = vmatpush1.msra.mxu0 %v47
    %188 = vmatprep.subr.mxu0 0.0
    %189 = vmatpush1.msra.mxu0 %v46
    %190 = vmatprep.subr.mxu0 0.0
    %191 = vmatpush2.msra.mxu0 0.0
    %192 = vmatprep.subr.mxu0 0.0
    %193 = vmatpush2.msra.mxu0 0.0
    %194 = vmatprep.subr.mxu0 0.0
    %195 = vmatpush2.msra.mxu0 0.0
    %196 = vmatprep.subr.mxu0 0.0
    %197 = vmatpush2.msra.mxu0 0.0
    %198 = vmatprep.subr.mxu0 0.0
    %199 = vmatpush2.msra.mxu0 0.0
    %200 = vmatprep.subr.mxu0 0.0
    %201 = vmatpush2.msra.mxu0 0.0
    %202 = vmatprep.subr.mxu0 0.0
    %203 = vmatpush2.msra.mxu0 0.0
    %204 = vmatprep.subr.mxu0 0.0
    %205 = vmatpush2.msra.mxu0 0.0
    %206 = vmatprep.subr.mxu0 0.0
    %207 = vmatpush2.msra.mxu0 0.0
    %208 = vmatprep.subr.mxu0 0.0
    %209 = vmatpush2.msra.mxu0 0.0
    %210 = vmatprep.subr.mxu0 0.0
    %211 = vmatpush2.msra.mxu0 0.0
    %212 = vmatprep.subr.mxu0 0.0
    %213 = vmatpush2.msra.mxu0 0.0
    %214 = vmatprep.subr.mxu0 0.0
    %215 = vmatpush2.msra.mxu0 0.0
    %216 = vmatprep.subr.mxu0 0.0
    %217 = vmatpush2.msra.mxu0 0.0
    %218 = vmatprep.subr.mxu0 0.0
    %219 = vmatpush2.msra.mxu0 0.0
    %220 = vmatprep.subr.mxu0 0.0
    %221 = vmatpush2.msra.mxu0 0.0
    %222 = vmatprep.mubr.f32.mxu0 0.0
    %223 = vmatmul.mubr.f32.gmra.mxu0 %v153
    %v224 = vpop.f32.mrf.mxu0
    %v225 = vadd.f32 %v143, %v224
    %v226 = vpop.f32.mrf.mxu0
    %227 = vmatprep.mubr.f32.mxu0 0.0
    %228 = vmatmul.mubr.f32.gmra.mxu0 %v156
    %v229 = vpop.f32.mrf.mxu0
    %v230 = vadd.f32 %v148, %v229
    %v231 = vpop.f32.mrf.mxu0
    %232 = vdwg.mxu0
    %v233 = vld [vmem:[%s2] sm:$0xff]
    %v234 = vld [vmem:[%s2 + $0x8] sm:$0xff]
    %235 = vset.pattern.permute.xlu0 0
    %236 = vperm.xlu0 %235, %v233
    %v237 = vpop.permute.xlu0 %236
    %238 = vset.pattern.permute.xlu0 0
    %239 = vperm.xlu0 %238, %v234
    %v240 = vpop.permute.xlu0 %239
    %vm241 = vcmp.eq.s32.totalorder %v237, %v33
    %vm242 = vcmp.eq.s32.totalorder %v240, %v33
    %v243 = vsel %vm241, 1, 0
    %v244 = vsel %vm242, 1, 0
    %v245 = vcvt.s32.f32 %v243
    %v246 = vcvt.s32.f32 %v244
    %v247 = vld [vmem:[%s5] sm:$0xff]
    %v248 = vld [vmem:[%s5 + $0x8] sm:$0xff]
    %vm249 = vcmask 130048
    %v251 = vsel %vm249, %v245, 0
    %v254 = vsel %vm249, %v246, 0
    %256 = vmatprep.subr.mxu0 0.0
    %257 = vmatpush1.msra.mxu0 0.0
    %258 = vmatprep.subr.mxu0 0.0
    %259 = vmatpush1.msra.mxu0 0.0
    %260 = vmatprep.subr.mxu0 0.0
    %261 = vmatpush1.msra.mxu0 0.0
    %262 = vmatprep.subr.mxu0 0.0
    %263 = vmatpush1.msra.mxu0 0.0
    %264 = vmatprep.subr.mxu0 0.0
    %265 = vmatpush1.msra.mxu0 0.0
    %266 = vmatprep.subr.mxu0 0.0
    %267 = vmatpush1.msra.mxu0 0.0
    %268 = vmatprep.subr.mxu0 0.0
    %269 = vmatpush1.msra.mxu0 0.0
    %270 = vmatprep.subr.mxu0 0.0
    %271 = vmatpush1.msra.mxu0 0.0
    %272 = vmatprep.subr.mxu0 0.0
    %273 = vmatpush1.msra.mxu0 0.0
    %274 = vmatprep.subr.mxu0 0.0
    %275 = vmatpush1.msra.mxu0 0.0
    %276 = vmatprep.subr.mxu0 0.0
    %277 = vmatpush1.msra.mxu0 0.0
    %278 = vmatprep.subr.mxu0 0.0
    %279 = vmatpush1.msra.mxu0 0.0
    %280 = vmatprep.subr.mxu0 0.0
    %281 = vmatpush1.msra.mxu0 0.0
    %282 = vmatprep.subr.mxu0 0.0
    %283 = vmatpush1.msra.mxu0 0.0
    %284 = vmatprep.subr.mxu0 0.0
    %285 = vmatpush1.msra.mxu0 %v248
    %286 = vmatprep.subr.mxu0 0.0
    %287 = vmatpush1.msra.mxu0 %v247
    %288 = vmatprep.subr.mxu0 0.0
    %289 = vmatpush2.msra.mxu0 0.0
    %290 = vmatprep.subr.mxu0 0.0
    %291 = vmatpush2.msra.mxu0 0.0
    %292 = vmatprep.subr.mxu0 0.0
    %293 = vmatpush2.msra.mxu0 0.0
    %294 = vmatprep.subr.mxu0 0.0
    %295 = vmatpush2.msra.mxu0 0.0
    %296 = vmatprep.subr.mxu0 0.0
    %297 = vmatpush2.msra.mxu0 0.0
    %298 = vmatprep.subr.mxu0 0.0
    %299 = vmatpush2.msra.mxu0 0.0
    %300 = vmatprep.subr.mxu0 0.0
    %301 = vmatpush2.msra.mxu0 0.0
    %302 = vmatprep.subr.mxu0 0.0
    %303 = vmatpush2.msra.mxu0 0.0
    %304 = vmatprep.subr.mxu0 0.0
    %305 = vmatpush2.msra.mxu0 0.0
    %306 = vmatprep.subr.mxu0 0.0
    %307 = vmatpush2.msra.mxu0 0.0
    %308 = vmatprep.subr.mxu0 0.0
    %309 = vmatpush2.msra.mxu0 0.0
    %310 = vmatprep.subr.mxu0 0.0
    %311 = vmatpush2.msra.mxu0 0.0
    %312 = vmatprep.subr.mxu0 0.0
    %313 = vmatpush2.msra.mxu0 0.0
    %314 = vmatprep.subr.mxu0 0.0
    %315 = vmatpush2.msra.mxu0 0.0
    %316 = vmatprep.subr.mxu0 0.0
    %317 = vmatpush2.msra.mxu0 0.0
    %318 = vmatprep.subr.mxu0 0.0
    %319 = vmatpush2.msra.mxu0 0.0
    %320 = vmatprep.mubr.f32.mxu0 0.0
    %321 = vmatmul.mubr.f32.gmra.mxu0 %v251
    %v322 = vpop.f32.mrf.mxu0
    %v323 = vadd.f32 0.0, %v322
    %v324 = vpop.f32.mrf.mxu0
    %325 = vmatprep.mubr.f32.mxu0 0.0
    %326 = vmatmul.mubr.f32.gmra.mxu0 %v254
    %v327 = vpop.f32.mrf.mxu0
    %v328 = vadd.f32 0.0, %v327
    %v329 = vpop.f32.mrf.mxu0
    %330 = vdwg.mxu0
    %v331 = vadd.f32 %v225, %v323
    %v332 = vadd.f32 %v230, %v328
    %v333 = vsel %vm151, %v331, 0.0
    %334 = vadd.xlane.f32.xlu0 %v333
    %v335 = vpop.xlane.xlu0 %334
    %v336 = vsel %vm151, %v332, 0.0
    %337 = vadd.xlane.f32.xlu0 %v336
    %v338 = vpop.xlane.xlu0 %337
    %v339 = vrcp.pop 32.0
    %v340 = vmul.f32 %v335, %v339
    %v341 = vmul.f32 %v338, %v339
    %v342 = vsub.f32 %v331, %v340
    %v343 = vsub.f32 %v332, %v341
    %v344 = vmul.f32 %v342, %v342
    %v345 = vmul.f32 %v343, %v343
    %v346 = vsel %vm151, %v344, 0.0
    %347 = vadd.xlane.f32.xlu0 %v346
    %v348 = vpop.xlane.xlu0 %347
    %v349 = vsel %vm151, %v345, 0.0
    %350 = vadd.xlane.f32.xlu0 %v349
    %v351 = vpop.xlane.xlu0 %350
    %v352 = vmul.f32 %v348, %v339
    %v353 = vmul.f32 %v351, %v339
    %v354 = vadd.f32 %v352, 1e-12
    %v355 = vadd.f32 %v353, 1e-12
    %v356 = vrsqrt.pop %v354
    %v357 = vrsqrt.pop %v355
    %v358 = vmul.f32 %v342, %v356
    %v359 = vmul.f32 %v343, %v357
    %v360 = vld [vmem:[%s6] sm:$0x1]
    %v362 = vlaneseq
    %v363 = vshrl.u32 %v362, 7
    %v364 = vsub.s32 0, %v363
    %v365 = vrot.slane %v360, %v364
    %v367 = vmul.f32 %v358, %v365
    %v368 = vmul.f32 %v359, %v365
    %v369 = vld [vmem:[%s7] sm:$0x1]
    %v371 = vlaneseq
    %v372 = vshrl.u32 %v371, 7
    %v373 = vsub.s32 0, %v372
    %v374 = vrot.slane %v369, %v373
    %v376 = vadd.f32 %v367, %v374
    %v377 = vadd.f32 %v368, %v374
    %378 = vst.msk [vmem:[#allocation2] sm:$0xff] %vm151, %v376
    %379 = vst.msk [vmem:[#allocation2 + $0x8] sm:$0xff] %vm151, %v377
    // Predicated region
    $region34: #{tpu_custom_call.1} parent=1 // pred_check
      _
    $region35: #{tpu_custom_call.1} parent=1 // pred_check_branch
      %381 = sbr.rel (0) target = $region37
    $region36: #{tpu_custom_call.1} parent=1 // pred_region
      %s383 = ssub.s32 256, 256
      %384 = vsyncadd [#allocation3], %s383
      %s385 = sshll.u32 [#allocation2], 4
      %s386 = int_to_ptr.vmem [resolvable:$true] %s385
      %391 = dma.vmem_to_hbm [thread:$0]  %s386, 256, %s8, [#allocation3], 128, 128, 8
    $region37: #{tpu_custom_call.1} parent=1 // pred_fallthru
      _
    // Predicated region
    $region38: #{tpu_custom_call.1} parent=1 // pred_check
      _
    $region39: #{tpu_custom_call.1} parent=1 // pred_check_branch
      %393 = sbr.rel (0) target = $region41
    $region40: #{tpu_custom_call.1} parent=1 // pred_region
      %394 = dma.done [#allocation3], 256
    $region41: #{tpu_custom_call.1} parent=1 // pred_fallthru
      _
    %395 = vsyncpa [#allocation3], 1

</llo_original>
